<compile_context>
chip_gen: v6e
topology: v6e:2x2x1
jax: 0.10.0
libtpu: 0.0.40
codegen_flags: <defaults>
</compile_context>

<pallas_src>
import functools
import math

import jax
import jax.numpy as jnp
from jax.experimental import pallas as pl
from jax.experimental.pallas import tpu as pltpu

NUM_DEVICES = 4          # num_of_devices in the PyTorch module
HID1, HID2 = 5, 10       # hidden channel counts from the module
KSIZE = 2                # all conv kernels have size 2
CPAD = 16                # channel padding for intermediate activations (>= 10)
LANE_TARGET = 2048       # target lane width per grid step (review: 1024-8192)


def _round_up(a, b):
    return -(-a // b) * b


# --------------------------------------------------------------------------
# Pallas kernel: full autoencoder forward for TB batch elements folded into
# the lane axis.  h is (C, LB): channels on sublanes, (batch, time) on lanes
# with lane = b*L + t.
# --------------------------------------------------------------------------
def _ae_kernel(x_ref, w0_ref, w1_ref, b_ref, pos_ref, o_ref, *, L, D,
               layer_kinds, layer_lens):
    LB = x_ref.shape[-1]                       # TB * L
    CP = w0_ref.shape[-1]                      # CPAD

    # Hoisted per-lane masks (pos = time index within each length-L segment).
    pos = jnp.broadcast_to(pos_ref[...], (CP, LB))          # (CP, LB) int32
    seg_start = pos == 0
    valid = {lout: pos < lout
             for lout in sorted({l for l in layer_lens if l < L})}

    h = x_ref[...]                                          # (D, LB) f32
    for i, (kind, lout) in enumerate(zip(layer_kinds, layer_lens)):
        if kind == "c":
            # Conv1d k=2: y[:,t] = w0 @ h[:,t] + w1 @ h[:,t+1].
            # The lane wrapped across a segment/block edge always lands at
            # pos == L-1 >= lout, so it is zeroed by the valid-mask below
            # (every Conv1d layer of this stack has lout < L; asserted in the
            # wrapper).
            hs = pltpu.roll(h, shift=LB - 1, axis=1)        # hs[:,t] = h[:,t+1]
        else:
            # ConvTranspose1d k=2: y[:,t] = w0 @ h[:,t] + w1 @ h[:,t-1].
            hs = pltpu.roll(h, shift=1, axis=1)             # hs[:,t] = h[:,t-1]
            hs = jnp.where(seg_start, 0.0, hs)              # no left tap at t==0

        w0, w1 = w0_ref[i], w1_ref[i]                       # (CP, CP) each
        if h.shape[0] != CP:                                # first layer: K = D
            w0, w1 = w0[:, :h.shape[0]], w1[:, :h.shape[0]]

        y = (jnp.dot(w0, h, preferred_element_type=jnp.float32)
             + jnp.dot(w1, hs, preferred_element_type=jnp.float32)
             + b_ref[i])                                    # (CP, LB)
        if i < len(layer_kinds) - 1:
            y = jnp.maximum(y, 0.0)                         # ReLU (all but last)

        # zero lanes beyond this layer's valid output length (per segment)
        h = jnp.where(valid[lout], y, 0.0) if lout < L else y

    # write only the D valid channel rows back to HBM
    o_ref[...] = h[:D, :]


# --------------------------------------------------------------------------
# Parameter setup (deterministic, PyTorch-shaped) and packing for the kernel.
# --------------------------------------------------------------------------
def init_params(key, d):
    """Returns list of (kind, weight, bias) with PyTorch shapes."""
    layer_defs = [
        ("c", d, HID1), ("c", HID1, HID2), ("c", HID2, HID1),   # encoder
        ("t", HID1, HID2), ("t", HID2, HID1), ("t", HID1, d),   # decoder
    ]
    params = []
    for kind, cin, cout in layer_defs:
        key, kw, kb = jax.random.split(key, 3)
        bound = 1.0 / float(cin * KSIZE) ** 0.5
        if kind == "c":
            w = jax.random.uniform(kw, (cout, cin, KSIZE), jnp.float32,
                                   -bound, bound)          # Conv1d weight
        else:
            w = jax.random.uniform(kw, (cin, cout, KSIZE), jnp.float32,
                                   -bound, bound)          # ConvTranspose1d weight
        b = jax.random.uniform(kb, (cout,), jnp.float32, -bound, bound)
        params.append((kind, w, b))
    return params


def pack_params(params):
    """Pack layers into per-tap (6, CPAD, CPAD) weights and (6, CPAD, 1) biases."""
    W0 = jnp.zeros((6, CPAD, CPAD), jnp.float32)
    W1 = jnp.zeros((6, CPAD, CPAD), jnp.float32)
    B = jnp.zeros((6, CPAD, 1), jnp.float32)
    for i, (kind, w, b) in enumerate(params):
        if kind == "c":
            m0, m1 = w[:, :, 0], w[:, :, 1]                # (cout, cin)
        else:
            m0, m1 = w[:, :, 0].T, w[:, :, 1].T            # (cout, cin)
        cout, cin = m0.shape
        W0 = W0.at[i, :cout, :cin].set(m0)
        W1 = W1.at[i, :cout, :cin].set(m1)
        B = B.at[i, :cout, 0].set(b)
    return W0, W1, B


# --------------------------------------------------------------------------
# Wrapper: fold batch into lanes (channel-major), call pallas_call, un-fold.
# --------------------------------------------------------------------------
def autoencoder_forward(x, params, lane_target=LANE_TARGET):
    N, D, L = x.shape
    assert L >= 4, "encoder needs L >= 4"
    W0, W1, B = pack_params(params)

    layer_kinds = ("c", "c", "c", "t", "t", "t")
    layer_lens = (L - 1, L - 2, L - 3, L - 2, L - 1, L)
    # Roll-wrap correctness relies on every Conv1d layer having lout < L.
    assert all(l < L for k, l in zip(layer_kinds, layer_lens) if k == "c")

    # Batch elements per grid step: lane width LB = TB*L must be a multiple of
    # 128; target ~lane_target lanes, but cap TB so a large batch keeps >= 2
    # grid steps (v7x megacore) and a tiny batch is not padded past one block.
    step = 128 // math.gcd(L, 128)
    tb_target = _round_up(pl.cdiv(lane_target, L), step)
    tb_cap = max(step, _round_up(pl.cdiv(N, 2), step))
    TB = min(tb_target, tb_cap)
    LB = TB * L
    NP = _round_up(N, TB)                      # batch padded to multiple of TB
    NB = NP // TB                              # grid size

    # channel-major, batch folded into lanes: lane = b*L + t  -> (D, NP*L)
    xp = jnp.zeros((D, NP * L), jnp.float32)
    xp = xp.at[:, :N * L].set(jnp.transpose(x, (1, 0, 2)).reshape(D, N * L))

    # per-lane time index within each batch segment (same for every block)
    pos = jnp.tile(jnp.arange(L, dtype=jnp.int32), TB).reshape(1, LB)

    kernel = functools.partial(_ae_kernel, L=L, D=D,
                               layer_kinds=layer_kinds, layer_lens=layer_lens)

    out = pl.pallas_call(
        kernel,
        out_shape=jax.ShapeDtypeStruct((D, NP * L), jnp.float32),
        grid=(NB,),
        in_specs=[
            pl.BlockSpec((D, LB), lambda n: (0, n)),             # input window
            pl.BlockSpec((6, CPAD, CPAD), lambda n: (0, 0, 0)),  # W0 resident
            pl.BlockSpec((6, CPAD, CPAD), lambda n: (0, 0, 0)),  # W1 resident
            pl.BlockSpec((6, CPAD, 1), lambda n: (0, 0, 0)),     # bias resident
            pl.BlockSpec((1, LB), lambda n: (0, 0)),             # pos resident
        ],
        out_specs=pl.BlockSpec((D, LB), lambda n: (0, n)),
        compiler_params=pltpu.CompilerParams(
            dimension_semantics=("parallel",)),
    )(xp, W0, W1, B, pos)

    # (D, NP*L) -> (N, D, L)
    out = out.reshape(D, NP, L).transpose(1, 0, 2)
    return out[:N]


# --------------------------------------------------------------------------
# Pure-JAX reference (scatter-form conv transpose) for a correctness check.
# --------------------------------------------------------------------------
def _conv1d_ref(x, w, b):
    return (jnp.einsum("oc,ncl->nol", w[:, :, 0], x[:, :, :-1])
            + jnp.einsum("oc,ncl->nol", w[:, :, 1], x[:, :, 1:])
            + b[None, :, None])


def _convT1d_ref(x, w, b):
    N, _, Lin = x.shape
    cout = w.shape[1]
    y = jnp.zeros((N, cout, Lin + 1), jnp.float32)
    y = y.at[:, :, :-1].add(jnp.einsum("co,ncl->nol", w[:, :, 0], x))
    y = y.at[:, :, 1:].add(jnp.einsum("co,ncl->nol", w[:, :, 1], x))
    return y + b[None, :, None]


def reference_forward(x, params):
    h = x
    for i, (kind, w, b) in enumerate(params):
        h = _conv1d_ref(h, w, b) if kind == "c" else _convT1d_ref(h, w, b)
        if i < 5:
            h = jax.nn.relu(h)
    return h


if __name__ == "__main__":
    key = jax.random.PRNGKey(0)
    kx, kp = jax.random.split(key)

    N, D, L = 2, NUM_DEVICES, 16            # small NCL input (like NCW Conv1d)
    x = jax.random.normal(kx, (N, D, L), dtype=jnp.float32)
    params = init_params(kp, D)

    out = autoencoder_forward(x, params)
    out = jax.block_until_ready(out)
    ref = reference_forward(x, params)

    assert out.shape == (N, D, L), out.shape
    assert jnp.allclose(out, ref, atol=1e-4, rtol=1e-4), \
        float(jnp.max(jnp.abs(out - ref)))
    print("KERNEL_OK")
</pallas_src>

<mosaic_0001>
module attributes {stable_mosaic.version = 11 : i64} {
  func.func @_ae_kernel(%arg0: i32, %arg1: memref<4x128xf32, #tpu.memory_space<vmem>>, %arg2: memref<6x16x16xf32, #tpu.memory_space<vmem>>, %arg3: memref<6x16x16xf32, #tpu.memory_space<vmem>>, %arg4: memref<6x16x1xf32, #tpu.memory_space<vmem>>, %arg5: memref<1x128xi32, #tpu.memory_space<vmem>>, %arg6: memref<4x128xf32, #tpu.memory_space<vmem>>) attributes {dimension_semantics = [#tpu.dimension_semantics<parallel>], iteration_bounds = array<i64: 1>, scalar_prefetch = 0 : i64, scratch_operands = 0 : i64, tpu.core_type = #tpu.core_type<tc>, window_params = [{transform_indices = @transform_0, window_bounds = array<i64: 4, 128>}, {pipeline_mode = #tpu.pipeline_mode<synchronous>, transform_indices = @transform_1, window_bounds = array<i64: 6, 16, 16>}, {pipeline_mode = #tpu.pipeline_mode<synchronous>, transform_indices = @transform_2, window_bounds = array<i64: 6, 16, 16>}, {pipeline_mode = #tpu.pipeline_mode<synchronous>, transform_indices = @transform_3, window_bounds = array<i64: 6, 16, 1>}, {pipeline_mode = #tpu.pipeline_mode<synchronous>, transform_indices = @transform_4, window_bounds = array<i64: 1, 128>}, {transform_indices = @transform_5, window_bounds = array<i64: 4, 128>}]} {
    %c0 = arith.constant 0 : index
    %c0_0 = arith.constant 0 : index
    %0 = vector.load %arg5[%c0, %c0_0] : memref<1x128xi32, #tpu.memory_space<vmem>>, vector<1x128xi32>
    %1 = vector.shape_cast %0 : vector<1x128xi32> to vector<1x128xi32>
    %2 = vector.broadcast %1 : vector<1x128xi32> to vector<16x128xi32>
    %c0_i32 = arith.constant 0 : i32
    %3 = vector.broadcast %c0_i32 : i32 to vector<16x128xi32>
    %4 = arith.cmpi eq, %2, %3 : vector<16x128xi32>
    %c13_i32 = arith.constant 13 : i32
    %5 = vector.broadcast %c13_i32 : i32 to vector<16x128xi32>
    %6 = arith.cmpi slt, %2, %5 : vector<16x128xi32>
    %c14_i32 = arith.constant 14 : i32
    %7 = vector.broadcast %c14_i32 : i32 to vector<16x128xi32>
    %8 = arith.cmpi slt, %2, %7 : vector<16x128xi32>
    %c15_i32 = arith.constant 15 : i32
    %9 = vector.broadcast %c15_i32 : i32 to vector<16x128xi32>
    %10 = arith.cmpi slt, %2, %9 : vector<16x128xi32>
    %c0_1 = arith.constant 0 : index
    %c0_2 = arith.constant 0 : index
    %11 = vector.load %arg1[%c0_1, %c0_2] : memref<4x128xf32, #tpu.memory_space<vmem>>, vector<4x128xf32>
    %c127_i32 = arith.constant 127 : i32
    %12 = tpu.dynamic_rotate %11 by %c127_i32 dim 1 : vector<4x128xf32>, i32 -> vector<4x128xf32>
    %c0_3 = arith.constant 0 : index
    %c0_4 = arith.constant 0 : index
    %c0_5 = arith.constant 0 : index
    %13 = vector.load %arg2[%c0_3, %c0_4, %c0_5] : memref<6x16x16xf32, #tpu.memory_space<vmem>>, vector<1x16x16xf32>
    %14 = vector.shape_cast %13 : vector<1x16x16xf32> to vector<16x16xf32>
    %c0_6 = arith.constant 0 : index
    %c0_7 = arith.constant 0 : index
    %c0_8 = arith.constant 0 : index
    %15 = vector.load %arg3[%c0_6, %c0_7, %c0_8] : memref<6x16x16xf32, #tpu.memory_space<vmem>>, vector<1x16x16xf32>
    %16 = vector.shape_cast %15 : vector<1x16x16xf32> to vector<16x16xf32>
    %17 = vector.extract_strided_slice %14 {offsets = [0, 0], sizes = [16, 4], strides = [1, 1]} : vector<16x16xf32> to vector<16x4xf32>
    %18 = vector.extract_strided_slice %16 {offsets = [0, 0], sizes = [16, 4], strides = [1, 1]} : vector<16x16xf32> to vector<16x4xf32>
    %cst = arith.constant dense<0.000000e+00> : vector<16x128xf32>
    %19 = tpu.matmul %17, %11, %cst {dimension_numbers = #tpu.dot_dimension_numbers<[1], [0], [0], [1], [0, 0, 1, 1], [], []>} : vector<16x4xf32>, vector<4x128xf32>, vector<16x128xf32> -> vector<16x128xf32>
    %cst_9 = arith.constant dense<0.000000e+00> : vector<16x128xf32>
    %20 = tpu.matmul %18, %12, %cst_9 {dimension_numbers = #tpu.dot_dimension_numbers<[1], [0], [0], [1], [0, 0, 1, 1], [], []>} : vector<16x4xf32>, vector<4x128xf32>, vector<16x128xf32> -> vector<16x128xf32>
    %21 = arith.addf %19, %20 : vector<16x128xf32>
    %c0_10 = arith.constant 0 : index
    %c0_11 = arith.constant 0 : index
    %c0_12 = arith.constant 0 : index
    %22 = vector.load %arg4[%c0_10, %c0_11, %c0_12] : memref<6x16x1xf32, #tpu.memory_space<vmem>>, vector<1x16x1xf32>
    %23 = vector.shape_cast %22 : vector<1x16x1xf32> to vector<16x1xf32>
    %24 = vector.broadcast %23 : vector<16x1xf32> to vector<16x128xf32>
    %25 = arith.addf %21, %24 : vector<16x128xf32>
    %cst_13 = arith.constant 0.000000e+00 : f32
    %26 = vector.broadcast %cst_13 : f32 to vector<16x128xf32>
    %27 = arith.maximumf %25, %26 : vector<16x128xf32>
    %cst_14 = arith.constant 0.000000e+00 : f32
    %28 = vector.broadcast %cst_14 : f32 to vector<16x128xf32>
    %29 = arith.select %10, %27, %28 : vector<16x128xi1>, vector<16x128xf32>
    %c127_i32_15 = arith.constant 127 : i32
    %30 = tpu.dynamic_rotate %29 by %c127_i32_15 dim 1 : vector<16x128xf32>, i32 -> vector<16x128xf32>
    %c1 = arith.constant 1 : index
    %c0_16 = arith.constant 0 : index
    %c0_17 = arith.constant 0 : index
    %31 = vector.load %arg2[%c1, %c0_16, %c0_17] : memref<6x16x16xf32, #tpu.memory_space<vmem>>, vector<1x16x16xf32>
    %32 = vector.shape_cast %31 : vector<1x16x16xf32> to vector<16x16xf32>
    %c1_18 = arith.constant 1 : index
    %c0_19 = arith.constant 0 : index
    %c0_20 = arith.constant 0 : index
    %33 = vector.load %arg3[%c1_18, %c0_19, %c0_20] : memref<6x16x16xf32, #tpu.memory_space<vmem>>, vector<1x16x16xf32>
    %34 = vector.shape_cast %33 : vector<1x16x16xf32> to vector<16x16xf32>
    %cst_21 = arith.constant dense<0.000000e+00> : vector<16x128xf32>
    %35 = tpu.matmul %32, %29, %cst_21 {dimension_numbers = #tpu.dot_dimension_numbers<[1], [0], [0], [1], [0, 0, 1, 1], [], []>} : vector<16x16xf32>, vector<16x128xf32>, vector<16x128xf32> -> vector<16x128xf32>
    %cst_22 = arith.constant dense<0.000000e+00> : vector<16x128xf32>
    %36 = tpu.matmul %34, %30, %cst_22 {dimension_numbers = #tpu.dot_dimension_numbers<[1], [0], [0], [1], [0, 0, 1, 1], [], []>} : vector<16x16xf32>, vector<16x128xf32>, vector<16x128xf32> -> vector<16x128xf32>
    %37 = arith.addf %35, %36 : vector<16x128xf32>
    %c1_23 = arith.constant 1 : index
    %c0_24 = arith.constant 0 : index
    %c0_25 = arith.constant 0 : index
    %38 = vector.load %arg4[%c1_23, %c0_24, %c0_25] : memref<6x16x1xf32, #tpu.memory_space<vmem>>, vector<1x16x1xf32>
    %39 = vector.shape_cast %38 : vector<1x16x1xf32> to vector<16x1xf32>
    %40 = vector.broadcast %39 : vector<16x1xf32> to vector<16x128xf32>
    %41 = arith.addf %37, %40 : vector<16x128xf32>
    %cst_26 = arith.constant 0.000000e+00 : f32
    %42 = vector.broadcast %cst_26 : f32 to vector<16x128xf32>
    %43 = arith.maximumf %41, %42 : vector<16x128xf32>
    %cst_27 = arith.constant 0.000000e+00 : f32
    %44 = vector.broadcast %cst_27 : f32 to vector<16x128xf32>
    %45 = arith.select %8, %43, %44 : vector<16x128xi1>, vector<16x128xf32>
    %c127_i32_28 = arith.constant 127 : i32
    %46 = tpu.dynamic_rotate %45 by %c127_i32_28 dim 1 : vector<16x128xf32>, i32 -> vector<16x128xf32>
    %c2 = arith.constant 2 : index
    %c0_29 = arith.constant 0 : index
    %c0_30 = arith.constant 0 : index
    %47 = vector.load %arg2[%c2, %c0_29, %c0_30] : memref<6x16x16xf32, #tpu.memory_space<vmem>>, vector<1x16x16xf32>
    %48 = vector.shape_cast %47 : vector<1x16x16xf32> to vector<16x16xf32>
    %c2_31 = arith.constant 2 : index
    %c0_32 = arith.constant 0 : index
    %c0_33 = arith.constant 0 : index
    %49 = vector.load %arg3[%c2_31, %c0_32, %c0_33] : memref<6x16x16xf32, #tpu.memory_space<vmem>>, vector<1x16x16xf32>
    %50 = vector.shape_cast %49 : vector<1x16x16xf32> to vector<16x16xf32>
    %cst_34 = arith.constant dense<0.000000e+00> : vector<16x128xf32>
    %51 = tpu.matmul %48, %45, %cst_34 {dimension_numbers = #tpu.dot_dimension_numbers<[1], [0], [0], [1], [0, 0, 1, 1], [], []>} : vector<16x16xf32>, vector<16x128xf32>, vector<16x128xf32> -> vector<16x128xf32>
    %cst_35 = arith.constant dense<0.000000e+00> : vector<16x128xf32>
    %52 = tpu.matmul %50, %46, %cst_35 {dimension_numbers = #tpu.dot_dimension_numbers<[1], [0], [0], [1], [0, 0, 1, 1], [], []>} : vector<16x16xf32>, vector<16x128xf32>, vector<16x128xf32> -> vector<16x128xf32>
    %53 = arith.addf %51, %52 : vector<16x128xf32>
    %c2_36 = arith.constant 2 : index
    %c0_37 = arith.constant 0 : index
    %c0_38 = arith.constant 0 : index
    %54 = vector.load %arg4[%c2_36, %c0_37, %c0_38] : memref<6x16x1xf32, #tpu.memory_space<vmem>>, vector<1x16x1xf32>
    %55 = vector.shape_cast %54 : vector<1x16x1xf32> to vector<16x1xf32>
    %56 = vector.broadcast %55 : vector<16x1xf32> to vector<16x128xf32>
    %57 = arith.addf %53, %56 : vector<16x128xf32>
    %cst_39 = arith.constant 0.000000e+00 : f32
    %58 = vector.broadcast %cst_39 : f32 to vector<16x128xf32>
    %59 = arith.maximumf %57, %58 : vector<16x128xf32>
    %cst_40 = arith.constant 0.000000e+00 : f32
    %60 = vector.broadcast %cst_40 : f32 to vector<16x128xf32>
    %61 = arith.select %6, %59, %60 : vector<16x128xi1>, vector<16x128xf32>
    %c1_i32 = arith.constant 1 : i32
    %62 = tpu.dynamic_rotate %61 by %c1_i32 dim 1 : vector<16x128xf32>, i32 -> vector<16x128xf32>
    %cst_41 = arith.constant 0.000000e+00 : f32
    %63 = vector.broadcast %cst_41 : f32 to vector<16x128xf32>
    %64 = arith.select %4, %63, %62 : vector<16x128xi1>, vector<16x128xf32>
    %c3 = arith.constant 3 : index
    %c0_42 = arith.constant 0 : index
    %c0_43 = arith.constant 0 : index
    %65 = vector.load %arg2[%c3, %c0_42, %c0_43] : memref<6x16x16xf32, #tpu.memory_space<vmem>>, vector<1x16x16xf32>
    %66 = vector.shape_cast %65 : vector<1x16x16xf32> to vector<16x16xf32>
    %c3_44 = arith.constant 3 : index
    %c0_45 = arith.constant 0 : index
    %c0_46 = arith.constant 0 : index
    %67 = vector.load %arg3[%c3_44, %c0_45, %c0_46] : memref<6x16x16xf32, #tpu.memory_space<vmem>>, vector<1x16x16xf32>
    %68 = vector.shape_cast %67 : vector<1x16x16xf32> to vector<16x16xf32>
    %cst_47 = arith.constant dense<0.000000e+00> : vector<16x128xf32>
    %69 = tpu.matmul %66, %61, %cst_47 {dimension_numbers = #tpu.dot_dimension_numbers<[1], [0], [0], [1], [0, 0, 1, 1], [], []>} : vector<16x16xf32>, vector<16x128xf32>, vector<16x128xf32> -> vector<16x128xf32>
    %cst_48 = arith.constant dense<0.000000e+00> : vector<16x128xf32>
    %70 = tpu.matmul %68, %64, %cst_48 {dimension_numbers = #tpu.dot_dimension_numbers<[1], [0], [0], [1], [0, 0, 1, 1], [], []>} : vector<16x16xf32>, vector<16x128xf32>, vector<16x128xf32> -> vector<16x128xf32>
    %71 = arith.addf %69, %70 : vector<16x128xf32>
    %c3_49 = arith.constant 3 : index
    %c0_50 = arith.constant 0 : index
    %c0_51 = arith.constant 0 : index
    %72 = vector.load %arg4[%c3_49, %c0_50, %c0_51] : memref<6x16x1xf32, #tpu.memory_space<vmem>>, vector<1x16x1xf32>
    %73 = vector.shape_cast %72 : vector<1x16x1xf32> to vector<16x1xf32>
    %74 = vector.broadcast %73 : vector<16x1xf32> to vector<16x128xf32>
    %75 = arith.addf %71, %74 : vector<16x128xf32>
    %cst_52 = arith.constant 0.000000e+00 : f32
    %76 = vector.broadcast %cst_52 : f32 to vector<16x128xf32>
    %77 = arith.maximumf %75, %76 : vector<16x128xf32>
    %cst_53 = arith.constant 0.000000e+00 : f32
    %78 = vector.broadcast %cst_53 : f32 to vector<16x128xf32>
    %79 = arith.select %8, %77, %78 : vector<16x128xi1>, vector<16x128xf32>
    %c1_i32_54 = arith.constant 1 : i32
    %80 = tpu.dynamic_rotate %79 by %c1_i32_54 dim 1 : vector<16x128xf32>, i32 -> vector<16x128xf32>
    %cst_55 = arith.constant 0.000000e+00 : f32
    %81 = vector.broadcast %cst_55 : f32 to vector<16x128xf32>
    %82 = arith.select %4, %81, %80 : vector<16x128xi1>, vector<16x128xf32>
    %c4 = arith.constant 4 : index
    %c0_56 = arith.constant 0 : index
    %c0_57 = arith.constant 0 : index
    %83 = vector.load %arg2[%c4, %c0_56, %c0_57] : memref<6x16x16xf32, #tpu.memory_space<vmem>>, vector<1x16x16xf32>
    %84 = vector.shape_cast %83 : vector<1x16x16xf32> to vector<16x16xf32>
    %c4_58 = arith.constant 4 : index
    %c0_59 = arith.constant 0 : index
    %c0_60 = arith.constant 0 : index
    %85 = vector.load %arg3[%c4_58, %c0_59, %c0_60] : memref<6x16x16xf32, #tpu.memory_space<vmem>>, vector<1x16x16xf32>
    %86 = vector.shape_cast %85 : vector<1x16x16xf32> to vector<16x16xf32>
    %cst_61 = arith.constant dense<0.000000e+00> : vector<16x128xf32>
    %87 = tpu.matmul %84, %79, %cst_61 {dimension_numbers = #tpu.dot_dimension_numbers<[1], [0], [0], [1], [0, 0, 1, 1], [], []>} : vector<16x16xf32>, vector<16x128xf32>, vector<16x128xf32> -> vector<16x128xf32>
    %cst_62 = arith.constant dense<0.000000e+00> : vector<16x128xf32>
    %88 = tpu.matmul %86, %82, %cst_62 {dimension_numbers = #tpu.dot_dimension_numbers<[1], [0], [0], [1], [0, 0, 1, 1], [], []>} : vector<16x16xf32>, vector<16x128xf32>, vector<16x128xf32> -> vector<16x128xf32>
    %89 = arith.addf %87, %88 : vector<16x128xf32>
    %c4_63 = arith.constant 4 : index
    %c0_64 = arith.constant 0 : index
    %c0_65 = arith.constant 0 : index
    %90 = vector.load %arg4[%c4_63, %c0_64, %c0_65] : memref<6x16x1xf32, #tpu.memory_space<vmem>>, vector<1x16x1xf32>
    %91 = vector.shape_cast %90 : vector<1x16x1xf32> to vector<16x1xf32>
    %92 = vector.broadcast %91 : vector<16x1xf32> to vector<16x128xf32>
    %93 = arith.addf %89, %92 : vector<16x128xf32>
    %cst_66 = arith.constant 0.000000e+00 : f32
    %94 = vector.broadcast %cst_66 : f32 to vector<16x128xf32>
    %95 = arith.maximumf %93, %94 : vector<16x128xf32>
    %cst_67 = arith.constant 0.000000e+00 : f32
    %96 = vector.broadcast %cst_67 : f32 to vector<16x128xf32>
    %97 = arith.select %10, %95, %96 : vector<16x128xi1>, vector<16x128xf32>
    %c1_i32_68 = arith.constant 1 : i32
    %98 = tpu.dynamic_rotate %97 by %c1_i32_68 dim 1 : vector<16x128xf32>, i32 -> vector<16x128xf32>
    %cst_69 = arith.constant 0.000000e+00 : f32
    %99 = vector.broadcast %cst_69 : f32 to vector<16x128xf32>
    %100 = arith.select %4, %99, %98 : vector<16x128xi1>, vector<16x128xf32>
    %c5 = arith.constant 5 : index
    %c0_70 = arith.constant 0 : index
    %c0_71 = arith.constant 0 : index
    %101 = vector.load %arg2[%c5, %c0_70, %c0_71] : memref<6x16x16xf32, #tpu.memory_space<vmem>>, vector<1x16x16xf32>
    %102 = vector.shape_cast %101 : vector<1x16x16xf32> to vector<16x16xf32>
    %c5_72 = arith.constant 5 : index
    %c0_73 = arith.constant 0 : index
    %c0_74 = arith.constant 0 : index
    %103 = vector.load %arg3[%c5_72, %c0_73, %c0_74] : memref<6x16x16xf32, #tpu.memory_space<vmem>>, vector<1x16x16xf32>
    %104 = vector.shape_cast %103 : vector<1x16x16xf32> to vector<16x16xf32>
    %cst_75 = arith.constant dense<0.000000e+00> : vector<16x128xf32>
    %105 = tpu.matmul %102, %97, %cst_75 {dimension_numbers = #tpu.dot_dimension_numbers<[1], [0], [0], [1], [0, 0, 1, 1], [], []>} : vector<16x16xf32>, vector<16x128xf32>, vector<16x128xf32> -> vector<16x128xf32>
    %cst_76 = arith.constant dense<0.000000e+00> : vector<16x128xf32>
    %106 = tpu.matmul %104, %100, %cst_76 {dimension_numbers = #tpu.dot_dimension_numbers<[1], [0], [0], [1], [0, 0, 1, 1], [], []>} : vector<16x16xf32>, vector<16x128xf32>, vector<16x128xf32> -> vector<16x128xf32>
    %107 = arith.addf %105, %106 : vector<16x128xf32>
    %c5_77 = arith.constant 5 : index
    %c0_78 = arith.constant 0 : index
    %c0_79 = arith.constant 0 : index
    %108 = vector.load %arg4[%c5_77, %c0_78, %c0_79] : memref<6x16x1xf32, #tpu.memory_space<vmem>>, vector<1x16x1xf32>
    %109 = vector.shape_cast %108 : vector<1x16x1xf32> to vector<16x1xf32>
    %110 = vector.broadcast %109 : vector<16x1xf32> to vector<16x128xf32>
    %111 = arith.addf %107, %110 : vector<16x128xf32>
    %112 = vector.extract_strided_slice %111 {offsets = [0, 0], sizes = [4, 128], strides = [1, 1]} : vector<16x128xf32> to vector<4x128xf32>
    %c0_80 = arith.constant 0 : index
    %c0_81 = arith.constant 0 : index
    %113 = vector.load %arg6[%c0_80, %c0_81] : memref<4x128xf32, #tpu.memory_space<vmem>>, vector<4x128xf32>
    tpu.vector_store %arg6[%c0_80, %c0_81], %112 {strides = array<i32>} : memref<4x128xf32, #tpu.memory_space<vmem>>, vector<4x128xf32>,
    return
  }
  func.func @transform_0(%arg0: i32) -> (i32, i32) {
    %c0_i32 = arith.constant 0 : i32
    %c0_i32_0 = arith.constant 0 : i32
    return %c0_i32, %arg0 : i32, i32
  }
  func.func @transform_1(%arg0: i32) -> (i32, i32, i32) {
    %c0_i32 = arith.constant 0 : i32
    %c0_i32_0 = arith.constant 0 : i32
    %c0_i32_1 = arith.constant 0 : i32
    %c0_i32_2 = arith.constant 0 : i32
    return %c0_i32, %c0_i32_0, %c0_i32_1 : i32, i32, i32
  }
  func.func @transform_2(%arg0: i32) -> (i32, i32, i32) {
    %c0_i32 = arith.constant 0 : i32
    %c0_i32_0 = arith.constant 0 : i32
    %c0_i32_1 = arith.constant 0 : i32
    %c0_i32_2 = arith.constant 0 : i32
    return %c0_i32, %c0_i32_0, %c0_i32_1 : i32, i32, i32
  }
  func.func @transform_3(%arg0: i32) -> (i32, i32, i32) {
    %c0_i32 = arith.constant 0 : i32
    %c0_i32_0 = arith.constant 0 : i32
    %c0_i32_1 = arith.constant 0 : i32
    %c0_i32_2 = arith.constant 0 : i32
    return %c0_i32, %c0_i32_0, %c0_i32_1 : i32, i32, i32
  }
  func.func @transform_4(%arg0: i32) -> (i32, i32) {
    %c0_i32 = arith.constant 0 : i32
    %c0_i32_0 = arith.constant 0 : i32
    %c0_i32_1 = arith.constant 0 : i32
    return %c0_i32, %c0_i32_0 : i32, i32
  }
  func.func @transform_5(%arg0: i32) -> (i32, i32) {
    %c0_i32 = arith.constant 0 : i32
    %c0_i32_0 = arith.constant 0 : i32
    return %c0_i32, %arg0 : i32, i32
  }
}

</mosaic_0001>

<llo_original>
// kernel: tpu_custom_call.1
$region0: #{tpu_custom_call.1}
  #allocation0 [shape = 'u32[]', space=smem, size = 0x4, offset = 0x4, fixed_abs, tag = 'smem constant byte address 0x4 - core index']
  #allocation1 [shape = 'u32[144,128]{1,0:T(1,128)}', space=vmem, size = 0x12000, scoped, tag = 'internal scratch']
  %s0 = inlined_call_operand.vmem [shape: f32[4,128], index: 0, kind: input, shape index: {}]
  %s1 = inlined_call_operand.vmem [shape: f32[6,16,16], index: 1, kind: input, shape index: {}]
  %s2 = inlined_call_operand.hbm [shape: f32[6,16,16], index: 2, kind: input, shape index: {}]
  %s3 = inlined_call_operand.vmem [shape: f32[6,16,1], index: 3, kind: input, shape index: {}]
  %s4 = inlined_call_operand.vmem [shape: s32[1,128], index: 4, kind: input, shape index: {}]
  %s5 = inlined_call_operand.hbm [shape: f32[4,128], index: 5, kind: output, shape index: {}]
  %s6 = sld [smem:[#allocation0]]
  $region34: #{tpu_custom_call.1} parent=0
    _
  %s8 = ssub.s32 1, %s6
  %s9 = scalar_select 0, %s8, %s6
  $region1: #{tpu_custom_call.1} parent=0
    #allocation2 [shape = 'u8[49152]{0}', space=vmem, size = 0xc000, scoped, tag = 'input window, operand 2, single buffered']
    #allocation3 [shape = 's32[1]{0}', space=sflag, size = 0x4, scoped, tag = 'scoped memory for tpu_custom_call.1']
    #allocation4 [shape = 's32[1]{0}', space=sflag, size = 0x4, scoped, tag = 'scoped memory for tpu_custom_call.1']
    #allocation5 [shape = 'u8[2048]{0}', space=vmem, size = 0x800, scoped, tag = 'output window, operand 0, single buffered']
    %10 = vsyncpa [#allocation3], 0
    %11 = vsyncpa [#allocation4], 0
    // Predicated region
    $region2: #{tpu_custom_call.1} parent=1 // pred_check
      _
    $region3: #{tpu_custom_call.1} parent=1 // pred_check_branch
      %13 = sbr.rel (0) target = $region5
    $region4: #{tpu_custom_call.1} parent=1 // pred_region
      _
    $region5: #{tpu_custom_call.1} parent=1 // pred_fallthru
      _
    // Predicated region
    $region6: #{tpu_custom_call.1} parent=1 // pred_check
      _
    $region7: #{tpu_custom_call.1} parent=1 // pred_check_branch
      %15 = sbr.rel (0) target = $region9
    $region8: #{tpu_custom_call.1} parent=1 // pred_region
      _
    $region9: #{tpu_custom_call.1} parent=1 // pred_fallthru
      _
    // Predicated region
    $region10: #{tpu_custom_call.1} parent=1 // pred_check
      _
    $region11: #{tpu_custom_call.1} parent=1 // pred_check_branch
      %17 = sbr.rel (0) target = $region13
    $region12: #{tpu_custom_call.1} parent=1 // pred_region
      %s19 = ssub.s32 1536, 1536
      %20 = vsyncadd [#allocation3], %s19
      %s21 = sshll.u32 [#allocation2], 4
      %s22 = int_to_ptr.vmem [resolvable:$true] %s21
      %27 = dma.hbm_to_vmem [thread:$0]  %s2, 1536, %s22, [#allocation3], 128, 128, 8
    $region13: #{tpu_custom_call.1} parent=1 // pred_fallthru
      _
    // Predicated region
    $region14: #{tpu_custom_call.1} parent=1 // pred_check
      _
    $region15: #{tpu_custom_call.1} parent=1 // pred_check_branch
      %29 = sbr.rel (0) target = $region17
    $region16: #{tpu_custom_call.1} parent=1 // pred_region
      _
    $region17: #{tpu_custom_call.1} parent=1 // pred_fallthru
      _
    // Predicated region
    $region18: #{tpu_custom_call.1} parent=1 // pred_check
      _
    $region19: #{tpu_custom_call.1} parent=1 // pred_check_branch
      %31 = sbr.rel (0) target = $region21
    $region20: #{tpu_custom_call.1} parent=1 // pred_region
      _
    $region21: #{tpu_custom_call.1} parent=1 // pred_fallthru
      _
    // Predicated region
    $region22: #{tpu_custom_call.1} parent=1 // pred_check
      _
    $region23: #{tpu_custom_call.1} parent=1 // pred_check_branch
      %33 = sbr.rel (0) target = $region25
    $region24: #{tpu_custom_call.1} parent=1 // pred_region
      %34 = dma.done [#allocation3], 1536
    $region25: #{tpu_custom_call.1} parent=1 // pred_fallthru
      _
    %v35 = vld [vmem:[%s4] sm:$0x1]
    %v36 = vlaneseq
    %v37 = vshrl.u32 %v36, 7
    %v38 = vsub.s32 0, %v37
    %v39 = vrot.slane %v35, %v38
    %vm40 = vcmp.eq.s32.totalorder %v39, 0
    %vm41 = vcmp.lt.s32.totalorder %v39, 13
    %vm42 = vcmp.lt.s32.totalorder %v39, 14
    %vm43 = vcmp.lt.s32.totalorder %v39, 15
    %v44 = vld [vmem:[%s0] sm:$0xf]
    %45 = vrot.lane.b32.xlu0 %v44, 127
    %v46 = vpop.permute.xlu0 %45
    %v47 = vld [vmem:[%s1] sm:$0xff]
    %v48 = vld [vmem:[%s1 + $0x8] sm:$0xff]
    %v49 = vld [vmem:[#allocation2] sm:$0xff]
    %v50 = vld [vmem:[#allocation2 + $0x8] sm:$0xff]
    %vm51 = vcmask 31744
    %v53 = vsel %vm51, %v49, 0
    %v56 = vsel %vm51, %v50, 0
    %vm58 = vcmask 1043456
    %v60 = vsel %vm58, %v46, 0
    %62 = vmatprep.subr.mxu0 0.0
    %63 = vmatpush1.msra.mxu0 0.0
    %64 = vmatprep.subr.mxu0 0.0
    %65 = vmatpush1.msra.mxu0 0.0
    %66 = vmatprep.subr.mxu0 0.0
    %67 = vmatpush1.msra.mxu0 0.0
    %68 = vmatprep.subr.mxu0 0.0
    %69 = vmatpush1.msra.mxu0 0.0
    %70 = vmatprep.subr.mxu0 0.0
    %71 = vmatpush1.msra.mxu0 0.0
    %72 = vmatprep.subr.mxu0 0.0
    %73 = vmatpush1.msra.mxu0 0.0
    %74 = vmatprep.subr.mxu0 0.0
    %75 = vmatpush1.msra.mxu0 0.0
    %76 = vmatprep.subr.mxu0 0.0
    %77 = vmatpush1.msra.mxu0 0.0
    %78 = vmatprep.subr.mxu0 0.0
    %79 = vmatpush1.msra.mxu0 0.0
    %80 = vmatprep.subr.mxu0 0.0
    %81 = vmatpush1.msra.mxu0 0.0
    %82 = vmatprep.subr.mxu0 0.0
    %83 = vmatpush1.msra.mxu0 0.0
    %84 = vmatprep.subr.mxu0 0.0
    %85 = vmatpush1.msra.mxu0 0.0
    %86 = vmatprep.subr.mxu0 0.0
    %87 = vmatpush1.msra.mxu0 0.0
    %88 = vmatprep.subr.mxu0 0.0
    %89 = vmatpush1.msra.mxu0 0.0
    %90 = vmatprep.subr.mxu0 0.0
    %91 = vmatpush1.msra.mxu0 0.0
    %92 = vmatprep.subr.mxu0 0.0
    %93 = vmatpush1.msra.mxu0 %v60
    %94 = vmatprep.subr.mxu0 0.0
    %95 = vmatpush2.msra.mxu0 0.0
    %96 = vmatprep.subr.mxu0 0.0
    %97 = vmatpush2.msra.mxu0 0.0
    %98 = vmatprep.subr.mxu0 0.0
    %99 = vmatpush2.msra.mxu0 0.0
    %100 = vmatprep.subr.mxu0 0.0
    %101 = vmatpush2.msra.mxu0 0.0
    %102 = vmatprep.subr.mxu0 0.0
    %103 = vmatpush2.msra.mxu0 0.0
    %104 = vmatprep.subr.mxu0 0.0
    %105 = vmatpush2.msra.mxu0 0.0
    %106 = vmatprep.subr.mxu0 0.0
    %107 = vmatpush2.msra.mxu0 0.0
    %108 = vmatprep.subr.mxu0 0.0
    %109 = vmatpush2.msra.mxu0 0.0
    %110 = vmatprep.subr.mxu0 0.0
    %111 = vmatpush2.msra.mxu0 0.0
    %112 = vmatprep.subr.mxu0 0.0
    %113 = vmatpush2.msra.mxu0 0.0
    %114 = vmatprep.subr.mxu0 0.0
    %115 = vmatpush2.msra.mxu0 0.0
    %116 = vmatprep.subr.mxu0 0.0
    %117 = vmatpush2.msra.mxu0 0.0
    %118 = vmatprep.subr.mxu0 0.0
    %119 = vmatpush2.msra.mxu0 0.0
    %120 = vmatprep.subr.mxu0 0.0
    %121 = vmatpush2.msra.mxu0 0.0
    %122 = vmatprep.subr.mxu0 0.0
    %123 = vmatpush2.msra.mxu0 0.0
    %124 = vmatprep.subr.mxu0 0.0
    %125 = vmatpush2.msra.mxu0 0.0
    %126 = vmatprep.mubr.f32.mxu0 0.0
    %127 = vmatmul.mubr.f32.gmra.mxu0 %v53
    %v128 = vpop.f32.mrf.mxu0
    %v129 = vadd.f32 0.0, %v128
    %v130 = vpop.f32.mrf.mxu0
    %131 = vmatprep.mubr.f32.mxu0 0.0
    %132 = vmatmul.mubr.f32.gmra.mxu0 %v56
    %v133 = vpop.f32.mrf.mxu0
    %v134 = vadd.f32 0.0, %v133
    %v135 = vpop.f32.mrf.mxu0
    %136 = vdwg.mxu0
    %v138 = vsel %vm51, %v47, 0
    %v141 = vsel %vm51, %v48, 0
    %v144 = vsel %vm58, %v44, 0
    %146 = vmatprep.subr.mxu0 0.0
    %147 = vmatpush1.msra.mxu0 0.0
    %148 = vmatprep.subr.mxu0 0.0
    %149 = vmatpush1.msra.mxu0 0.0
    %150 = vmatprep.subr.mxu0 0.0
    %151 = vmatpush1.msra.mxu0 0.0
    %152 = vmatprep.subr.mxu0 0.0
    %153 = vmatpush1.msra.mxu0 0.0
    %154 = vmatprep.subr.mxu0 0.0
    %155 = vmatpush1.msra.mxu0 0.0
    %156 = vmatprep.subr.mxu0 0.0
    %157 = vmatpush1.msra.mxu0 0.0
    %158 = vmatprep.subr.mxu0 0.0
    %159 = vmatpush1.msra.mxu0 0.0
    %160 = vmatprep.subr.mxu0 0.0
    %161 = vmatpush1.msra.mxu0 0.0
    %162 = vmatprep.subr.mxu0 0.0
    %163 = vmatpush1.msra.mxu0 0.0
    %164 = vmatprep.subr.mxu0 0.0
    %165 = vmatpush1.msra.mxu0 0.0
    %166 = vmatprep.subr.mxu0 0.0
    %167 = vmatpush1.msra.mxu0 0.0
    %168 = vmatprep.subr.mxu0 0.0
    %169 = vmatpush1.msra.mxu0 0.0
    %170 = vmatprep.subr.mxu0 0.0
    %171 = vmatpush1.msra.mxu0 0.0
    %172 = vmatprep.subr.mxu0 0.0
    %173 = vmatpush1.msra.mxu0 0.0
    %174 = vmatprep.subr.mxu0 0.0
    %175 = vmatpush1.msra.mxu0 0.0
    %176 = vmatprep.subr.mxu0 0.0
    %177 = vmatpush1.msra.mxu0 %v144
    %178 = vmatprep.subr.mxu0 0.0
    %179 = vmatpush2.msra.mxu0 0.0
    %180 = vmatprep.subr.mxu0 0.0
    %181 = vmatpush2.msra.mxu0 0.0
    %182 = vmatprep.subr.mxu0 0.0
    %183 = vmatpush2.msra.mxu0 0.0
    %184 = vmatprep.subr.mxu0 0.0
    %185 = vmatpush2.msra.mxu0 0.0
    %186 = vmatprep.subr.mxu0 0.0
    %187 = vmatpush2.msra.mxu0 0.0
    %188 = vmatprep.subr.mxu0 0.0
    %189 = vmatpush2.msra.mxu0 0.0
    %190 = vmatprep.subr.mxu0 0.0
    %191 = vmatpush2.msra.mxu0 0.0
    %192 = vmatprep.subr.mxu0 0.0
    %193 = vmatpush2.msra.mxu0 0.0
    %194 = vmatprep.subr.mxu0 0.0
    %195 = vmatpush2.msra.mxu0 0.0
    %196 = vmatprep.subr.mxu0 0.0
    %197 = vmatpush2.msra.mxu0 0.0
    %198 = vmatprep.subr.mxu0 0.0
    %199 = vmatpush2.msra.mxu0 0.0
    %200 = vmatprep.subr.mxu0 0.0
    %201 = vmatpush2.msra.mxu0 0.0
    %202 = vmatprep.subr.mxu0 0.0
    %203 = vmatpush2.msra.mxu0 0.0
    %204 = vmatprep.subr.mxu0 0.0
    %205 = vmatpush2.msra.mxu0 0.0
    %206 = vmatprep.subr.mxu0 0.0
    %207 = vmatpush2.msra.mxu0 0.0
    %208 = vmatprep.subr.mxu0 0.0
    %209 = vmatpush2.msra.mxu0 0.0
    %210 = vmatprep.mubr.f32.mxu0 0.0
    %211 = vmatmul.mubr.f32.gmra.mxu0 %v138
    %v212 = vpop.f32.mrf.mxu0
    %v213 = vadd.f32 %v129, %v212
    %v214 = vpop.f32.mrf.mxu0
    %215 = vmatprep.mubr.f32.mxu0 0.0
    %216 = vmatmul.mubr.f32.gmra.mxu0 %v141
    %v217 = vpop.f32.mrf.mxu0
    %v218 = vadd.f32 %v134, %v217
    %v219 = vpop.f32.mrf.mxu0
    %220 = vdwg.mxu0
    %v221 = vld [vmem:[%s3] sm:$0xff]
    %v222 = vld [vmem:[%s3 + $0x8] sm:$0xff]
    %224 = vset.pattern.permute.xlu0 0
    %225 = vperm.xlu0 %224, %v221
    %v226 = vpop.permute.xlu0 %225
    %229 = vset.pattern.permute.xlu0 0
    %230 = vperm.xlu0 %229, %v222
    %v231 = vpop.permute.xlu0 %230
    %v233 = vadd.f32 %v213, %v226
    %v234 = vadd.f32 %v218, %v231
    %v235 = vmax.f32 %v233, 0.0
    %v236 = vmax.f32 %v234, 0.0
    %v237 = vsel %vm43, %v235, 0.0
    %v238 = vsel %vm43, %v236, 0.0
    %239 = vrot.lane.b32.xlu0 %v237, 127
    %v240 = vpop.permute.xlu0 %239
    %241 = vrot.lane.b32.xlu0 %v238, 127
    %v242 = vpop.permute.xlu0 %241
    %s243 = scalar_lea.vmem %s1, 16
    %v244 = vld [vmem:[%s243] sm:$0xff]
    %v245 = vld [vmem:[%s243 + $0x8] sm:$0xff]
    %s246 = scalar_lea.vmem [#allocation2], 16
    %v247 = vld [vmem:[%s246] sm:$0xff]
    %v248 = vld [vmem:[%s246 + $0x8] sm:$0xff]
    %vm249 = vcmask 130048
    %v251 = vsel %vm249, %v247, 0
    %v254 = vsel %vm249, %v248, 0
    %256 = vmatprep.subr.mxu0 0.0
    %257 = vmatpush1.msra.mxu0 0.0
    %258 = vmatprep.subr.mxu0 0.0
    %259 = vmatpush1.msra.mxu0 0.0
    %260 = vmatprep.subr.mxu0 0.0
    %261 = vmatpush1.msra.mxu0 0.0
    %262 = vmatprep.subr.mxu0 0.0
    %263 = vmatpush1.msra.mxu0 0.0
    %264 = vmatprep.subr.mxu0 0.0
    %265 = vmatpush1.msra.mxu0 0.0
    %266 = vmatprep.subr.mxu0 0.0
    %267 = vmatpush1.msra.mxu0 0.0
    %268 = vmatprep.subr.mxu0 0.0
    %269 = vmatpush1.msra.mxu0 0.0
    %270 = vmatprep.subr.mxu0 0.0
    %271 = vmatpush1.msra.mxu0 0.0
    %272 = vmatprep.subr.mxu0 0.0
    %273 = vmatpush1.msra.mxu0 0.0
    %274 = vmatprep.subr.mxu0 0.0
    %275 = vmatpush1.msra.mxu0 0.0
    %276 = vmatprep.subr.mxu0 0.0
    %277 = vmatpush1.msra.mxu0 0.0
    %278 = vmatprep.subr.mxu0 0.0
    %279 = vmatpush1.msra.mxu0 0.0
    %280 = vmatprep.subr.mxu0 0.0
    %281 = vmatpush1.msra.mxu0 0.0
    %282 = vmatprep.subr.mxu0 0.0
    %283 = vmatpush1.msra.mxu0 0.0
    %284 = vmatprep.subr.mxu0 0.0
    %285 = vmatpush1.msra.mxu0 %v242
    %286 = vmatprep.subr.mxu0 0.0
    %287 = vmatpush1.msra.mxu0 %v240
    %288 = vmatprep.subr.mxu0 0.0
    %289 = vmatpush2.msra.mxu0 0.0
    %290 = vmatprep.subr.mxu0 0.0
    %291 = vmatpush2.msra.mxu0 0.0
    %292 = vmatprep.subr.mxu0 0.0
    %293 = vmatpush2.msra.mxu0 0.0
    %294 = vmatprep.subr.mxu0 0.0
    %295 = vmatpush2.msra.mxu0 0.0
    %296 = vmatprep.subr.mxu0 0.0
    %297 = vmatpush2.msra.mxu0 0.0
    %298 = vmatprep.subr.mxu0 0.0
    %299 = vmatpush2.msra.mxu0 0.0
    %300 = vmatprep.subr.mxu0 0.0
    %301 = vmatpush2.msra.mxu0 0.0
    %302 = vmatprep.subr.mxu0 0.0
    %303 = vmatpush2.msra.mxu0 0.0
    %304 = vmatprep.subr.mxu0 0.0
    %305 = vmatpush2.msra.mxu0 0.0
    %306 = vmatprep.subr.mxu0 0.0
    %307 = vmatpush2.msra.mxu0 0.0
    %308 = vmatprep.subr.mxu0 0.0
    %309 = vmatpush2.msra.mxu0 0.0
    %310 = vmatprep.subr.mxu0 0.0
    %311 = vmatpush2.msra.mxu0 0.0
    %312 = vmatprep.subr.mxu0 0.0
    %313 = vmatpush2.msra.mxu0 0.0
    %314 = vmatprep.subr.mxu0 0.0
    %315 = vmatpush2.msra.mxu0 0.0
    %316 = vmatprep.subr.mxu0 0.0
    %317 = vmatpush2.msra.mxu0 0.0
    %318 = vmatprep.subr.mxu0 0.0
    %319 = vmatpush2.msra.mxu0 0.0
    %320 = vmatprep.mubr.f32.mxu0 0.0
    %321 = vmatmul.mubr.f32.gmra.mxu0 %v251
    %v322 = vpop.f32.mrf.mxu0
    %v323 = vadd.f32 0.0, %v322
    %v324 = vpop.f32.mrf.mxu0
    %325 = vmatprep.mubr.f32.mxu0 0.0
    %326 = vmatmul.mubr.f32.gmra.mxu0 %v254
    %v327 = vpop.f32.mrf.mxu0
    %v328 = vadd.f32 0.0, %v327
    %v329 = vpop.f32.mrf.mxu0
    %330 = vdwg.mxu0
    %v332 = vsel %vm249, %v244, 0
    %v335 = vsel %vm249, %v245, 0
    %337 = vmatprep.subr.mxu0 0.0
    %338 = vmatpush1.msra.mxu0 0.0
    %339 = vmatprep.subr.mxu0 0.0
    %340 = vmatpush1.msra.mxu0 0.0
    %341 = vmatprep.subr.mxu0 0.0
    %342 = vmatpush1.msra.mxu0 0.0
    %343 = vmatprep.subr.mxu0 0.0
    %344 = vmatpush1.msra.mxu0 0.0
    %345 = vmatprep.subr.mxu0 0.0
    %346 = vmatpush1.msra.mxu0 0.0
    %347 = vmatprep.subr.mxu0 0.0
    %348 = vmatpush1.msra.mxu0 0.0
    %349 = vmatprep.subr.mxu0 0.0
    %350 = vmatpush1.msra.mxu0 0.0
    %351 = vmatprep.subr.mxu0 0.0
    %352 = vmatpush1.msra.mxu0 0.0
    %353 = vmatprep.subr.mxu0 0.0
    %354 = vmatpush1.msra.mxu0 0.0
    %355 = vmatprep.subr.mxu0 0.0
    %356 = vmatpush1.msra.mxu0 0.0
    %357 = vmatprep.subr.mxu0 0.0
    %358 = vmatpush1.msra.mxu0 0.0
    %359 = vmatprep.subr.mxu0 0.0
    %360 = vmatpush1.msra.mxu0 0.0
    %361 = vmatprep.subr.mxu0 0.0
    %362 = vmatpush1.msra.mxu0 0.0
    %363 = vmatprep.subr.mxu0 0.0
    %364 = vmatpush1.msra.mxu0 0.0
    %365 = vmatprep.subr.mxu0 0.0
    %366 = vmatpush1.msra.mxu0 %v238
    %367 = vmatprep.subr.mxu0 0.0
    %368 = vmatpush1.msra.mxu0 %v237
    %369 = vmatprep.subr.mxu0 0.0
    %370 = vmatpush2.msra.mxu0 0.0
    %371 = vmatprep.subr.mxu0 0.0
    %372 = vmatpush2.msra.mxu0 0.0
    %373 = vmatprep.subr.mxu0 0.0
    %374 = vmatpush2.msra.mxu0 0.0
    %375 = vmatprep.subr.mxu0 0.0
    %376 = vmatpush2.msra.mxu0 0.0
    %377 = vmatprep.subr.mxu0 0.0
    %378 = vmatpush2.msra.mxu0 0.0
    %379 = vmatprep.subr.mxu0 0.0
    %380 = vmatpush2.msra.mxu0 0.0
    %381 = vmatprep.subr.mxu0 0.0
    %382 = vmatpush2.msra.mxu0 0.0
    %383 = vmatprep.subr.mxu0 0.0
    %384 = vmatpush2.msra.mxu0 0.0
    %385 = vmatprep.subr.mxu0 0.0
    %386 = vmatpush2.msra.mxu0 0.0
    %387 = vmatprep.subr.mxu0 0.0
    %388 = vmatpush2.msra.mxu0 0.0
    %389 = vmatprep.subr.mxu0 0.0
    %390 = vmatpush2.msra.mxu0 0.0
    %391 = vmatprep.subr.mxu0 0.0
    %392 = vmatpush2.msra.mxu0 0.0
    %393 = vmatprep.subr.mxu0 0.0
    %394 = vmatpush2.msra.mxu0 0.0
    %395 = vmatprep.subr.mxu0 0.0
    %396 = vmatpush2.msra.mxu0 0.0
    %397 = vmatprep.subr.mxu0 0.0
    %398 = vmatpush2.msra.mxu0 0.0
    %399 = vmatprep.subr.mxu0 0.0
    %400 = vmatpush2.msra.mxu0 0.0
    %401 = vmatprep.mubr.f32.mxu0 0.0
    %402 = vmatmul.mubr.f32.gmra.mxu0 %v332
    %v403 = vpop.f32.mrf.mxu0
    %v404 = vadd.f32 %v323, %v403
    %v405 = vpop.f32.mrf.mxu0
    %406 = vmatprep.mubr.f32.mxu0 0.0
    %407 = vmatmul.mubr.f32.gmra.mxu0 %v335
    %v408 = vpop.f32.mrf.mxu0
    %v409 = vadd.f32 %v328, %v408
    %v410 = vpop.f32.mrf.mxu0
    %411 = vdwg.mxu0
    %s412 = scalar_lea.vmem %s3, 16
    %v413 = vld [vmem:[%s412] sm:$0xff]
    %v414 = vld [vmem:[%s412 + $0x8] sm:$0xff]
    %416 = vset.pattern.permute.xlu0 0
    %417 = vperm.xlu0 %416, %v413
    %v418 = vpop.permute.xlu0 %417
    %421 = vset.pattern.permute.xlu0 0
    %422 = vperm.xlu0 %421, %v414
    %v423 = vpop.permute.xlu0 %422
    %v425 = vadd.f32 %v404, %v418
    %v426 = vadd.f32 %v409, %v423
    %v427 = vmax.f32 %v425, 0.0
    %v428 = vmax.f32 %v426, 0.0
    %v429 = vsel %vm42, %v427, 0.0
    %v430 = vsel %vm42, %v428, 0.0
    %431 = vrot.lane.b32.xlu0 %v429, 127
    %v432 = vpop.permute.xlu0 %431
    %433 = vrot.lane.b32.xlu0 %v430, 127
    %v434 = vpop.permute.xlu0 %433
    %s435 = scalar_lea.vmem %s1, 32
    %v436 = vld [vmem:[%s435] sm:$0xff]
    %v437 = vld [vmem:[%s435 + $0x8] sm:$0xff]
    %s438 = scalar_lea.vmem [#allocation2], 32
    %v439 = vld [vmem:[%s438] sm:$0xff]
    %v440 = vld [vmem:[%s438 + $0x8] sm:$0xff]
    %v442 = vsel %vm249, %v439, 0
    %v445 = vsel %vm249, %v440, 0
    %447 = vmatprep.subr.mxu0 0.0
    %448 = vmatpush1.msra.mxu0 0.0
    %449 = vmatprep.subr.mxu0 0.0
    %450 = vmatpush1.msra.mxu0 0.0
    %451 = vmatprep.subr.mxu0 0.0
    %452 = vmatpush1.msra.mxu0 0.0
    %453 = vmatprep.subr.mxu0 0.0
    %454 = vmatpush1.msra.mxu0 0.0
    %455 = vmatprep.subr.mxu0 0.0
    %456 = vmatpush1.msra.mxu0 0.0
    %457 = vmatprep.subr.mxu0 0.0
    %458 = vmatpush1.msra.mxu0 0.0
    %459 = vmatprep.subr.mxu0 0.0
    %460 = vmatpush1.msra.mxu0 0.0
    %461 = vmatprep.subr.mxu0 0.0
    %462 = vmatpush1.msra.mxu0 0.0
    %463 = vmatprep.subr.mxu0 0.0
    %464 = vmatpush1.msra.mxu0 0.0
    %465 = vmatprep.subr.mxu0 0.0
    %466 = vmatpush1.msra.mxu0 0.0
    %467 = vmatprep.subr.mxu0 0.0
    %468 = vmatpush1.msra.mxu0 0.0
    %469 = vmatprep.subr.mxu0 0.0
    %470 = vmatpush1.msra.mxu0 0.0
    %471 = vmatprep.subr.mxu0 0.0
    %472 = vmatpush1.msra.mxu0 0.0
    %473 = vmatprep.subr.mxu0 0.0
    %474 = vmatpush1.msra.mxu0 0.0
    %475 = vmatprep.subr.mxu0 0.0
    %476 = vmatpush1.msra.mxu0 %v434
    %477 = vmatprep.subr.mxu0 0.0
    %478 = vmatpush1.msra.mxu0 %v432
    %479 = vmatprep.subr.mxu0 0.0
    %480 = vmatpush2.msra.mxu0 0.0
    %481 = vmatprep.subr.mxu0 0.0
    %482 = vmatpush2.msra.mxu0 0.0
    %483 = vmatprep.subr.mxu0 0.0
    %484 = vmatpush2.msra.mxu0 0.0
    %485 = vmatprep.subr.mxu0 0.0
    %486 = vmatpush2.msra.mxu0 0.0
    %487 = vmatprep.subr.mxu0 0.0
    %488 = vmatpush2.msra.mxu0 0.0
    %489 = vmatprep.subr.mxu0 0.0
    %490 = vmatpush2.msra.mxu0 0.0
    %491 = vmatprep.subr.mxu0 0.0
    %492 = vmatpush2.msra.mxu0 0.0
    %493 = vmatprep.subr.mxu0 0.0
    %494 = vmatpush2.msra.mxu0 0.0
    %495 = vmatprep.subr.mxu0 0.0
    %496 = vmatpush2.msra.mxu0 0.0
    %497 = vmatprep.subr.mxu0 0.0
    %498 = vmatpush2.msra.mxu0 0.0
    %499 = vmatprep.subr.mxu0 0.0
    %500 = vmatpush2.msra.mxu0 0.0
    %501 = vmatprep.subr.mxu0 0.0
    %502 = vmatpush2.msra.mxu0 0.0
    %503 = vmatprep.subr.mxu0 0.0
    %504 = vmatpush2.msra.mxu0 0.0
    %505 = vmatprep.subr.mxu0 0.0
    %506 = vmatpush2.msra.mxu0 0.0
    %507 = vmatprep.subr.mxu0 0.0
    %508 = vmatpush2.msra.mxu0 0.0
    %509 = vmatprep.subr.mxu0 0.0
    %510 = vmatpush2.msra.mxu0 0.0
    %511 = vmatprep.mubr.f32.mxu0 0.0
    %512 = vmatmul.mubr.f32.gmra.mxu0 %v442
    %v513 = vpop.f32.mrf.mxu0
    %v514 = vadd.f32 0.0, %v513
    %v515 = vpop.f32.mrf.mxu0
    %516 = vmatprep.mubr.f32.mxu0 0.0
    %517 = vmatmul.mubr.f32.gmra.mxu0 %v445
    %v518 = vpop.f32.mrf.mxu0
    %v519 = vadd.f32 0.0, %v518
    %v520 = vpop.f32.mrf.mxu0
    %521 = vdwg.mxu0
    %v523 = vsel %vm249, %v436, 0
    %v526 = vsel %vm249, %v437, 0
    %528 = vmatprep.subr.mxu0 0.0
    %529 = vmatpush1.msra.mxu0 0.0
    %530 = vmatprep.subr.mxu0 0.0
    %531 = vmatpush1.msra.mxu0 0.0
    %532 = vmatprep.subr.mxu0 0.0
    %533 = vmatpush1.msra.mxu0 0.0
    %534 = vmatprep.subr.mxu0 0.0
    %535 = vmatpush1.msra.mxu0 0.0
    %536 = vmatprep.subr.mxu0 0.0
    %537 = vmatpush1.msra.mxu0 0.0
    %538 = vmatprep.subr.mxu0 0.0
    %539 = vmatpush1.msra.mxu0 0.0
    %540 = vmatprep.subr.mxu0 0.0
    %541 = vmatpush1.msra.mxu0 0.0
    %542 = vmatprep.subr.mxu0 0.0
    %543 = vmatpush1.msra.mxu0 0.0
    %544 = vmatprep.subr.mxu0 0.0
    %545 = vmatpush1.msra.mxu0 0.0
    %546 = vmatprep.subr.mxu0 0.0
    %547 = vmatpush1.msra.mxu0 0.0
    %548 = vmatprep.subr.mxu0 0.0
    %549 = vmatpush1.msra.mxu0 0.0
    %550 = vmatprep.subr.mxu0 0.0
    %551 = vmatpush1.msra.mxu0 0.0
    %552 = vmatprep.subr.mxu0 0.0
    %553 = vmatpush1.msra.mxu0 0.0
    %554 = vmatprep.subr.mxu0 0.0
    %555 = vmatpush1.msra.mxu0 0.0
    %556 = vmatprep.subr.mxu0 0.0
    %557 = vmatpush1.msra.mxu0 %v430
    %558 = vmatprep.subr.mxu0 0.0
    %559 = vmatpush1.msra.mxu0 %v429
    %560 = vmatprep.subr.mxu0 0.0
    %561 = vmatpush2.msra.mxu0 0.0
    %562 = vmatprep.subr.mxu0 0.0
    %563 = vmatpush2.msra.mxu0 0.0
    %564 = vmatprep.subr.mxu0 0.0
    %565 = vmatpush2.msra.mxu0 0.0
    %566 = vmatprep.subr.mxu0 0.0
    %567 = vmatpush2.msra.mxu0 0.0
    %568 = vmatprep.subr.mxu0 0.0
    %569 = vmatpush2.msra.mxu0 0.0
    %570 = vmatprep.subr.mxu0 0.0
    %571 = vmatpush2.msra.mxu0 0.0
    %572 = vmatprep.subr.mxu0 0.0
    %573 = vmatpush2.msra.mxu0 0.0
    %574 = vmatprep.subr.mxu0 0.0
    %575 = vmatpush2.msra.mxu0 0.0
    %576 = vmatprep.subr.mxu0 0.0
    %577 = vmatpush2.msra.mxu0 0.0
    %578 = vmatprep.subr.mxu0 0.0
    %579 = vmatpush2.msra.mxu0 0.0
    %580 = vmatprep.subr.mxu0 0.0
    %581 = vmatpush2.msra.mxu0 0.0
    %582 = vmatprep.subr.mxu0 0.0
    %583 = vmatpush2.msra.mxu0 0.0
    %584 = vmatprep.subr.mxu0 0.0
    %585 = vmatpush2.msra.mxu0 0.0
    %586 = vmatprep.subr.mxu0 0.0
    %587 = vmatpush2.msra.mxu0 0.0
    %588 = vmatprep.subr.mxu0 0.0
    %589 = vmatpush2.msra.mxu0 0.0
    %590 = vmatprep.subr.mxu0 0.0
    %591 = vmatpush2.msra.mxu0 0.0
    %592 = vmatprep.mubr.f32.mxu0 0.0
    %593 = vmatmul.mubr.f32.gmra.mxu0 %v523
    %v594 = vpop.f32.mrf.mxu0
    %v595 = vadd.f32 %v514, %v594
    %v596 = vpop.f32.mrf.mxu0
    %597 = vmatprep.mubr.f32.mxu0 0.0
    %598 = vmatmul.mubr.f32.gmra.mxu0 %v526
    %v599 = vpop.f32.mrf.mxu0
    %v600 = vadd.f32 %v519, %v599
    %v601 = vpop.f32.mrf.mxu0
    %602 = vdwg.mxu0
    %s603 = scalar_lea.vmem %s3, 32
    %v604 = vld [vmem:[%s603] sm:$0xff]
    %v605 = vld [vmem:[%s603 + $0x8] sm:$0xff]
    %607 = vset.pattern.permute.xlu0 0
    %608 = vperm.xlu0 %607, %v604
    %v609 = vpop.permute.xlu0 %608
    %612 = vset.pattern.permute.xlu0 0
    %613 = vperm.xlu0 %612, %v605
    %v614 = vpop.permute.xlu0 %613
    %v616 = vadd.f32 %v595, %v609
    %v617 = vadd.f32 %v600, %v614
    %v618 = vmax.f32 %v616, 0.0
    %v619 = vmax.f32 %v617, 0.0
    %v620 = vsel %vm41, %v618, 0.0
    %v621 = vsel %vm41, %v619, 0.0
    %622 = vrot.lane.b32.xlu0 %v620, 1
    %v623 = vpop.permute.xlu0 %622
    %624 = vrot.lane.b32.xlu0 %v621, 1
    %v625 = vpop.permute.xlu0 %624
    %v626 = vsel %vm40, 0.0, %v623
    %v627 = vsel %vm40, 0.0, %v625
    %s628 = scalar_lea.vmem %s1, 48
    %v629 = vld [vmem:[%s628] sm:$0xff]
    %v630 = vld [vmem:[%s628 + $0x8] sm:$0xff]
    %s631 = scalar_lea.vmem [#allocation2], 48
    %v632 = vld [vmem:[%s631] sm:$0xff]
    %v633 = vld [vmem:[%s631 + $0x8] sm:$0xff]
    %v635 = vsel %vm249, %v632, 0
    %v638 = vsel %vm249, %v633, 0
    %640 = vmatprep.subr.mxu0 0.0
    %641 = vmatpush1.msra.mxu0 0.0
    %642 = vmatprep.subr.mxu0 0.0
    %643 = vmatpush1.msra.mxu0 0.0
    %644 = vmatprep.subr.mxu0 0.0
    %645 = vmatpush1.msra.mxu0 0.0
    %646 = vmatprep.subr.mxu0 0.0
    %647 = vmatpush1.msra.mxu0 0.0
    %648 = vmatprep.subr.mxu0 0.0
    %649 = vmatpush1.msra.mxu0 0.0
    %650 = vmatprep.subr.mxu0 0.0
    %651 = vmatpush1.msra.mxu0 0.0
    %652 = vmatprep.subr.mxu0 0.0
    %653 = vmatpush1.msra.mxu0 0.0
    %654 = vmatprep.subr.mxu0 0.0
    %655 = vmatpush1.msra.mxu0 0.0
    %656 = vmatprep.subr.mxu0 0.0
    %657 = vmatpush1.msra.mxu0 0.0
    %658 = vmatprep.subr.mxu0 0.0
    %659 = vmatpush1.msra.mxu0 0.0
    %660 = vmatprep.subr.mxu0 0.0
    %661 = vmatpush1.msra.mxu0 0.0
    %662 = vmatprep.subr.mxu0 0.0
    %663 = vmatpush1.msra.mxu0 0.0
    %664 = vmatprep.subr.mxu0 0.0
    %665 = vmatpush1.msra.mxu0 0.0
    %666 = vmatprep.subr.mxu0 0.0
    %667 = vmatpush1.msra.mxu0 0.0
    %668 = vmatprep.subr.mxu0 0.0
    %669 = vmatpush1.msra.mxu0 %v627
    %670 = vmatprep.subr.mxu0 0.0
    %671 = vmatpush1.msra.mxu0 %v626
    %672 = vmatprep.subr.mxu0 0.0
    %673 = vmatpush2.msra.mxu0 0.0
    %674 = vmatprep.subr.mxu0 0.0
    %675 = vmatpush2.msra.mxu0 0.0
    %676 = vmatprep.subr.mxu0 0.0
    %677 = vmatpush2.msra.mxu0 0.0
    %678 = vmatprep.subr.mxu0 0.0
    %679 = vmatpush2.msra.mxu0 0.0
    %680 = vmatprep.subr.mxu0 0.0
    %681 = vmatpush2.msra.mxu0 0.0
    %682 = vmatprep.subr.mxu0 0.0
    %683 = vmatpush2.msra.mxu0 0.0
    %684 = vmatprep.subr.mxu0 0.0
    %685 = vmatpush2.msra.mxu0 0.0
    %686 = vmatprep.subr.mxu0 0.0
    %687 = vmatpush2.msra.mxu0 0.0
    %688 = vmatprep.subr.mxu0 0.0
    %689 = vmatpush2.msra.mxu0 0.0
    %690 = vmatprep.subr.mxu0 0.0
    %691 = vmatpush2.msra.mxu0 0.0
    %692 = vmatprep.subr.mxu0 0.0
    %693 = vmatpush2.msra.mxu0 0.0
    %694 = vmatprep.subr.mxu0 0.0
    %695 = vmatpush2.msra.mxu0 0.0
    %696 = vmatprep.subr.mxu0 0.0
    %697 = vmatpush2.msra.mxu0 0.0
    %698 = vmatprep.subr.mxu0 0.0
    %699 = vmatpush2.msra.mxu0 0.0
    %700 = vmatprep.subr.mxu0 0.0
    %701 = vmatpush2.msra.mxu0 0.0
    %702 = vmatprep.subr.mxu0 0.0
    %703 = vmatpush2.msra.mxu0 0.0
    %704 = vmatprep.mubr.f32.mxu0 0.0
    %705 = vmatmul.mubr.f32.gmra.mxu0 %v635
    %v706 = vpop.f32.mrf.mxu0
    %v707 = vadd.f32 0.0, %v706
    %v708 = vpop.f32.mrf.mxu0
    %709 = vmatprep.mubr.f32.mxu0 0.0
    %710 = vmatmul.mubr.f32.gmra.mxu0 %v638
    %v711 = vpop.f32.mrf.mxu0
    %v712 = vadd.f32 0.0, %v711
    %v713 = vpop.f32.mrf.mxu0
    %714 = vdwg.mxu0
    %v716 = vsel %vm249, %v629, 0
    %v719 = vsel %vm249, %v630, 0
    %721 = vmatprep.subr.mxu0 0.0
    %722 = vmatpush1.msra.mxu0 0.0
    %723 = vmatprep.subr.mxu0 0.0
    %724 = vmatpush1.msra.mxu0 0.0
    %725 = vmatprep.subr.mxu0 0.0
    %726 = vmatpush1.msra.mxu0 0.0
    %727 = vmatprep.subr.mxu0 0.0
    %728 = vmatpush1.msra.mxu0 0.0
    %729 = vmatprep.subr.mxu0 0.0
    %730 = vmatpush1.msra.mxu0 0.0
    %731 = vmatprep.subr.mxu0 0.0
    %732 = vmatpush1.msra.mxu0 0.0
    %733 = vmatprep.subr.mxu0 0.0
    %734 = vmatpush1.msra.mxu0 0.0
    %735 = vmatprep.subr.mxu0 0.0
    %736 = vmatpush1.msra.mxu0 0.0
    %737 = vmatprep.subr.mxu0 0.0
    %738 = vmatpush1.msra.mxu0 0.0
    %739 = vmatprep.subr.mxu0 0.0
    %740 = vmatpush1.msra.mxu0 0.0
    %741 = vmatprep.subr.mxu0 0.0
    %742 = vmatpush1.msra.mxu0 0.0
    %743 = vmatprep.subr.mxu0 0.0
    %744 = vmatpush1.msra.mxu0 0.0
    %745 = vmatprep.subr.mxu0 0.0
    %746 = vmatpush1.msra.mxu0 0.0
    %747 = vmatprep.subr.mxu0 0.0
    %748 = vmatpush1.msra.mxu0 0.0
    %749 = vmatprep.subr.mxu0 0.0
    %750 = vmatpush1.msra.mxu0 %v621
    %751 = vmatprep.subr.mxu0 0.0
    %752 = vmatpush1.msra.mxu0 %v620
    %753 = vmatprep.subr.mxu0 0.0
    %754 = vmatpush2.msra.mxu0 0.0
    %755 = vmatprep.subr.mxu0 0.0
    %756 = vmatpush2.msra.mxu0 0.0
    %757 = vmatprep.subr.mxu0 0.0
    %758 = vmatpush2.msra.mxu0 0.0
    %759 = vmatprep.subr.mxu0 0.0
    %760 = vmatpush2.msra.mxu0 0.0
    %761 = vmatprep.subr.mxu0 0.0
    %762 = vmatpush2.msra.mxu0 0.0
    %763 = vmatprep.subr.mxu0 0.0
    %764 = vmatpush2.msra.mxu0 0.0
    %765 = vmatprep.subr.mxu0 0.0
    %766 = vmatpush2.msra.mxu0 0.0
    %767 = vmatprep.subr.mxu0 0.0
    %768 = vmatpush2.msra.mxu0 0.0
    %769 = vmatprep.subr.mxu0 0.0
    %770 = vmatpush2.msra.mxu0 0.0
    %771 = vmatprep.subr.mxu0 0.0
    %772 = vmatpush2.msra.mxu0 0.0
    %773 = vmatprep.subr.mxu0 0.0
    %774 = vmatpush2.msra.mxu0 0.0
    %775 = vmatprep.subr.mxu0 0.0
    %776 = vmatpush2.msra.mxu0 0.0
    %777 = vmatprep.subr.mxu0 0.0
    %778 = vmatpush2.msra.mxu0 0.0
    %779 = vmatprep.subr.mxu0 0.0
    %780 = vmatpush2.msra.mxu0 0.0
    %781 = vmatprep.subr.mxu0 0.0
    %782 = vmatpush2.msra.mxu0 0.0
    %783 = vmatprep.subr.mxu0 0.0
    %784 = vmatpush2.msra.mxu0 0.0
    %785 = vmatprep.mubr.f32.mxu0 0.0
    %786 = vmatmul.mubr.f32.gmra.mxu0 %v716
    %v787 = vpop.f32.mrf.mxu0
    %v788 = vadd.f32 %v707, %v787
    %v789 = vpop.f32.mrf.mxu0
    %790 = vmatprep.mubr.f32.mxu0 0.0
    %791 = vmatmul.mubr.f32.gmra.mxu0 %v719
    %v792 = vpop.f32.mrf.mxu0
    %v793 = vadd.f32 %v712, %v792
    %v794 = vpop.f32.mrf.mxu0
    %795 = vdwg.mxu0
    %s796 = scalar_lea.vmem %s3, 48
    %v797 = vld [vmem:[%s796] sm:$0xff]
    %v798 = vld [vmem:[%s796 + $0x8] sm:$0xff]
    %800 = vset.pattern.permute.xlu0 0
    %801 = vperm.xlu0 %800, %v797
    %v802 = vpop.permute.xlu0 %801
    %805 = vset.pattern.permute.xlu0 0
    %806 = vperm.xlu0 %805, %v798
    %v807 = vpop.permute.xlu0 %806
    %v809 = vadd.f32 %v788, %v802
    %v810 = vadd.f32 %v793, %v807
    %v811 = vmax.f32 %v809, 0.0
    %v812 = vmax.f32 %v810, 0.0
    %v813 = vsel %vm42, %v811, 0.0
    %v814 = vsel %vm42, %v812, 0.0
    %815 = vrot.lane.b32.xlu0 %v813, 1
    %v816 = vpop.permute.xlu0 %815
    %817 = vrot.lane.b32.xlu0 %v814, 1
    %v818 = vpop.permute.xlu0 %817
    %v819 = vsel %vm40, 0.0, %v816
    %v820 = vsel %vm40, 0.0, %v818
    %s821 = scalar_lea.vmem %s1, 64
    %v822 = vld [vmem:[%s821] sm:$0xff]
    %v823 = vld [vmem:[%s821 + $0x8] sm:$0xff]
    %s824 = scalar_lea.vmem [#allocation2], 64
    %v825 = vld [vmem:[%s824] sm:$0xff]
    %v826 = vld [vmem:[%s824 + $0x8] sm:$0xff]
    %v828 = vsel %vm249, %v825, 0
    %v831 = vsel %vm249, %v826, 0
    %833 = vmatprep.subr.mxu0 0.0
    %834 = vmatpush1.msra.mxu0 0.0
    %835 = vmatprep.subr.mxu0 0.0
    %836 = vmatpush1.msra.mxu0 0.0
    %837 = vmatprep.subr.mxu0 0.0
    %838 = vmatpush1.msra.mxu0 0.0
    %839 = vmatprep.subr.mxu0 0.0
    %840 = vmatpush1.msra.mxu0 0.0
    %841 = vmatprep.subr.mxu0 0.0
    %842 = vmatpush1.msra.mxu0 0.0
    %843 = vmatprep.subr.mxu0 0.0
    %844 = vmatpush1.msra.mxu0 0.0
    %845 = vmatprep.subr.mxu0 0.0
    %846 = vmatpush1.msra.mxu0 0.0
    %847 = vmatprep.subr.mxu0 0.0
    %848 = vmatpush1.msra.mxu0 0.0
    %849 = vmatprep.subr.mxu0 0.0
    %850 = vmatpush1.msra.mxu0 0.0
    %851 = vmatprep.subr.mxu0 0.0
    %852 = vmatpush1.msra.mxu0 0.0
    %853 = vmatprep.subr.mxu0 0.0
    %854 = vmatpush1.msra.mxu0 0.0
    %855 = vmatprep.subr.mxu0 0.0
    %856 = vmatpush1.msra.mxu0 0.0
    %857 = vmatprep.subr.mxu0 0.0
    %858 = vmatpush1.msra.mxu0 0.0
    %859 = vmatprep.subr.mxu0 0.0
    %860 = vmatpush1.msra.mxu0 0.0
    %861 = vmatprep.subr.mxu0 0.0
    %862 = vmatpush1.msra.mxu0 %v820
    %863 = vmatprep.subr.mxu0 0.0
    %864 = vmatpush1.msra.mxu0 %v819
    %865 = vmatprep.subr.mxu0 0.0
    %866 = vmatpush2.msra.mxu0 0.0
    %867 = vmatprep.subr.mxu0 0.0
    %868 = vmatpush2.msra.mxu0 0.0
    %869 = vmatprep.subr.mxu0 0.0
    %870 = vmatpush2.msra.mxu0 0.0
    %871 = vmatprep.subr.mxu0 0.0
    %872 = vmatpush2.msra.mxu0 0.0
    %873 = vmatprep.subr.mxu0 0.0
    %874 = vmatpush2.msra.mxu0 0.0
    %875 = vmatprep.subr.mxu0 0.0
    %876 = vmatpush2.msra.mxu0 0.0
    %877 = vmatprep.subr.mxu0 0.0
    %878 = vmatpush2.msra.mxu0 0.0
    %879 = vmatprep.subr.mxu0 0.0
    %880 = vmatpush2.msra.mxu0 0.0
    %881 = vmatprep.subr.mxu0 0.0
    %882 = vmatpush2.msra.mxu0 0.0
    %883 = vmatprep.subr.mxu0 0.0
    %884 = vmatpush2.msra.mxu0 0.0
    %885 = vmatprep.subr.mxu0 0.0
    %886 = vmatpush2.msra.mxu0 0.0
    %887 = vmatprep.subr.mxu0 0.0
    %888 = vmatpush2.msra.mxu0 0.0
    %889 = vmatprep.subr.mxu0 0.0
    %890 = vmatpush2.msra.mxu0 0.0
    %891 = vmatprep.subr.mxu0 0.0
    %892 = vmatpush2.msra.mxu0 0.0
    %893 = vmatprep.subr.mxu0 0.0
    %894 = vmatpush2.msra.mxu0 0.0
    %895 = vmatprep.subr.mxu0 0.0
    %896 = vmatpush2.msra.mxu0 0.0
    %897 = vmatprep.mubr.f32.mxu0 0.0
    %898 = vmatmul.mubr.f32.gmra.mxu0 %v828
    %v899 = vpop.f32.mrf.mxu0
    %v900 = vadd.f32 0.0, %v899
    %v901 = vpop.f32.mrf.mxu0
    %902 = vmatprep.mubr.f32.mxu0 0.0
    %903 = vmatmul.mubr.f32.gmra.mxu0 %v831
    %v904 = vpop.f32.mrf.mxu0
    %v905 = vadd.f32 0.0, %v904
    %v906 = vpop.f32.mrf.mxu0
    %907 = vdwg.mxu0
    %v909 = vsel %vm249, %v822, 0
    %v912 = vsel %vm249, %v823, 0
    %914 = vmatprep.subr.mxu0 0.0
    %915 = vmatpush1.msra.mxu0 0.0
    %916 = vmatprep.subr.mxu0 0.0
    %917 = vmatpush1.msra.mxu0 0.0
    %918 = vmatprep.subr.mxu0 0.0
    %919 = vmatpush1.msra.mxu0 0.0
    %920 = vmatprep.subr.mxu0 0.0
    %921 = vmatpush1.msra.mxu0 0.0
    %922 = vmatprep.subr.mxu0 0.0
    %923 = vmatpush1.msra.mxu0 0.0
    %924 = vmatprep.subr.mxu0 0.0
    %925 = vmatpush1.msra.mxu0 0.0
    %926 = vmatprep.subr.mxu0 0.0
    %927 = vmatpush1.msra.mxu0 0.0
    %928 = vmatprep.subr.mxu0 0.0
    %929 = vmatpush1.msra.mxu0 0.0
    %930 = vmatprep.subr.mxu0 0.0
    %931 = vmatpush1.msra.mxu0 0.0
    %932 = vmatprep.subr.mxu0 0.0
    %933 = vmatpush1.msra.mxu0 0.0
    %934 = vmatprep.subr.mxu0 0.0
    %935 = vmatpush1.msra.mxu0 0.0
    %936 = vmatprep.subr.mxu0 0.0
    %937 = vmatpush1.msra.mxu0 0.0
    %938 = vmatprep.subr.mxu0 0.0
    %939 = vmatpush1.msra.mxu0 0.0
    %940 = vmatprep.subr.mxu0 0.0
    %941 = vmatpush1.msra.mxu0 0.0
    %942 = vmatprep.subr.mxu0 0.0
    %943 = vmatpush1.msra.mxu0 %v814
    %944 = vmatprep.subr.mxu0 0.0
    %945 = vmatpush1.msra.mxu0 %v813
    %946 = vmatprep.subr.mxu0 0.0
    %947 = vmatpush2.msra.mxu0 0.0
    %948 = vmatprep.subr.mxu0 0.0
    %949 = vmatpush2.msra.mxu0 0.0
    %950 = vmatprep.subr.mxu0 0.0
    %951 = vmatpush2.msra.mxu0 0.0
    %952 = vmatprep.subr.mxu0 0.0
    %953 = vmatpush2.msra.mxu0 0.0
    %954 = vmatprep.subr.mxu0 0.0
    %955 = vmatpush2.msra.mxu0 0.0
    %956 = vmatprep.subr.mxu0 0.0
    %957 = vmatpush2.msra.mxu0 0.0
    %958 = vmatprep.subr.mxu0 0.0
    %959 = vmatpush2.msra.mxu0 0.0
    %960 = vmatprep.subr.mxu0 0.0
    %961 = vmatpush2.msra.mxu0 0.0
    %962 = vmatprep.subr.mxu0 0.0
    %963 = vmatpush2.msra.mxu0 0.0
    %964 = vmatprep.subr.mxu0 0.0
    %965 = vmatpush2.msra.mxu0 0.0
    %966 = vmatprep.subr.mxu0 0.0
    %967 = vmatpush2.msra.mxu0 0.0
    %968 = vmatprep.subr.mxu0 0.0
    %969 = vmatpush2.msra.mxu0 0.0
    %970 = vmatprep.subr.mxu0 0.0
    %971 = vmatpush2.msra.mxu0 0.0
    %972 = vmatprep.subr.mxu0 0.0
    %973 = vmatpush2.msra.mxu0 0.0
    %974 = vmatprep.subr.mxu0 0.0
    %975 = vmatpush2.msra.mxu0 0.0
    %976 = vmatprep.subr.mxu0 0.0
    %977 = vmatpush2.msra.mxu0 0.0
    %978 = vmatprep.mubr.f32.mxu0 0.0
    %979 = vmatmul.mubr.f32.gmra.mxu0 %v909
    %v980 = vpop.f32.mrf.mxu0
    %v981 = vadd.f32 %v900, %v980
    %v982 = vpop.f32.mrf.mxu0
    %983 = vmatprep.mubr.f32.mxu0 0.0
    %984 = vmatmul.mubr.f32.gmra.mxu0 %v912
    %v985 = vpop.f32.mrf.mxu0
    %v986 = vadd.f32 %v905, %v985
    %v987 = vpop.f32.mrf.mxu0
    %988 = vdwg.mxu0
    %s989 = scalar_lea.vmem %s3, 64
    %v990 = vld [vmem:[%s989] sm:$0xff]
    %v991 = vld [vmem:[%s989 + $0x8] sm:$0xff]
    %993 = vset.pattern.permute.xlu0 0
    %994 = vperm.xlu0 %993, %v990
    %v995 = vpop.permute.xlu0 %994
    %998 = vset.pattern.permute.xlu0 0
    %999 = vperm.xlu0 %998, %v991
    %v1000 = vpop.permute.xlu0 %999
    %v1002 = vadd.f32 %v981, %v995
    %v1003 = vadd.f32 %v986, %v1000
    %v1004 = vmax.f32 %v1002, 0.0
    %v1005 = vmax.f32 %v1003, 0.0
    %v1006 = vsel %vm43, %v1004, 0.0
    %v1007 = vsel %vm43, %v1005, 0.0
    %1008 = vrot.lane.b32.xlu0 %v1006, 1
    %v1009 = vpop.permute.xlu0 %1008
    %1010 = vrot.lane.b32.xlu0 %v1007, 1
    %v1011 = vpop.permute.xlu0 %1010
    %v1012 = vsel %vm40, 0.0, %v1009
    %v1013 = vsel %vm40, 0.0, %v1011
    %s1014 = scalar_lea.vmem %s1, 80
    %v1015 = vld [vmem:[%s1014] sm:$0xff]
    %v1016 = vld [vmem:[%s1014 + $0x8] sm:$0xff]
    %s1017 = scalar_lea.vmem [#allocation2], 80
    %v1018 = vld [vmem:[%s1017] sm:$0xff]
    %v1019 = vld [vmem:[%s1017 + $0x8] sm:$0xff]
    %v1021 = vsel %vm249, %v1018, 0
    %v1024 = vsel %vm249, %v1019, 0
    %1026 = vmatprep.subr.mxu0 0.0
    %1027 = vmatpush1.msra.mxu0 0.0
    %1028 = vmatprep.subr.mxu0 0.0
    %1029 = vmatpush1.msra.mxu0 0.0
    %1030 = vmatprep.subr.mxu0 0.0
    %1031 = vmatpush1.msra.mxu0 0.0
    %1032 = vmatprep.subr.mxu0 0.0
    %1033 = vmatpush1.msra.mxu0 0.0
    %1034 = vmatprep.subr.mxu0 0.0
    %1035 = vmatpush1.msra.mxu0 0.0
    %1036 = vmatprep.subr.mxu0 0.0
    %1037 = vmatpush1.msra.mxu0 0.0
    %1038 = vmatprep.subr.mxu0 0.0
    %1039 = vmatpush1.msra.mxu0 0.0
    %1040 = vmatprep.subr.mxu0 0.0
    %1041 = vmatpush1.msra.mxu0 0.0
    %1042 = vmatprep.subr.mxu0 0.0
    %1043 = vmatpush1.msra.mxu0 0.0
    %1044 = vmatprep.subr.mxu0 0.0
    %1045 = vmatpush1.msra.mxu0 0.0
    %1046 = vmatprep.subr.mxu0 0.0
    %1047 = vmatpush1.msra.mxu0 0.0
    %1048 = vmatprep.subr.mxu0 0.0
    %1049 = vmatpush1.msra.mxu0 0.0
    %1050 = vmatprep.subr.mxu0 0.0
    %1051 = vmatpush1.msra.mxu0 0.0
    %1052 = vmatprep.subr.mxu0 0.0
    %1053 = vmatpush1.msra.mxu0 0.0
    %1054 = vmatprep.subr.mxu0 0.0
    %1055 = vmatpush1.msra.mxu0 %v1013
    %1056 = vmatprep.subr.mxu0 0.0
    %1057 = vmatpush1.msra.mxu0 %v1012
    %1058 = vmatprep.subr.mxu0 0.0
    %1059 = vmatpush2.msra.mxu0 0.0
    %1060 = vmatprep.subr.mxu0 0.0
    %1061 = vmatpush2.msra.mxu0 0.0
    %1062 = vmatprep.subr.mxu0 0.0
    %1063 = vmatpush2.msra.mxu0 0.0
    %1064 = vmatprep.subr.mxu0 0.0
    %1065 = vmatpush2.msra.mxu0 0.0
    %1066 = vmatprep.subr.mxu0 0.0
    %1067 = vmatpush2.msra.mxu0 0.0
    %1068 = vmatprep.subr.mxu0 0.0
    %1069 = vmatpush2.msra.mxu0 0.0
    %1070 = vmatprep.subr.mxu0 0.0
    %1071 = vmatpush2.msra.mxu0 0.0
    %1072 = vmatprep.subr.mxu0 0.0
    %1073 = vmatpush2.msra.mxu0 0.0
    %1074 = vmatprep.subr.mxu0 0.0
    %1075 = vmatpush2.msra.mxu0 0.0
    %1076 = vmatprep.subr.mxu0 0.0
    %1077 = vmatpush2.msra.mxu0 0.0
    %1078 = vmatprep.subr.mxu0 0.0
    %1079 = vmatpush2.msra.mxu0 0.0
    %1080 = vmatprep.subr.mxu0 0.0
    %1081 = vmatpush2.msra.mxu0 0.0
    %1082 = vmatprep.subr.mxu0 0.0
    %1083 = vmatpush2.msra.mxu0 0.0
    %1084 = vmatprep.subr.mxu0 0.0
    %1085 = vmatpush2.msra.mxu0 0.0
    %1086 = vmatprep.subr.mxu0 0.0
    %1087 = vmatpush2.msra.mxu0 0.0
    %1088 = vmatprep.subr.mxu0 0.0
    %1089 = vmatpush2.msra.mxu0 0.0
    %1090 = vmatprep.mubr.f32.mxu0 0.0
    %1091 = vmatmul.mubr.f32.gmra.mxu0 %v1021
    %v1092 = vpop.f32.mrf.mxu0
    %v1093 = vadd.f32 0.0, %v1092
    %v1094 = vpop.f32.mrf.mxu0
    %1095 = vmatprep.mubr.f32.mxu0 0.0
    %1096 = vmatmul.mubr.f32.gmra.mxu0 %v1024
    %v1097 = vpop.f32.mrf.mxu0
    %v1098 = vpop.f32.mrf.mxu0
    %1099 = vdwg.mxu0
    %v1101 = vsel %vm249, %v1015, 0
    %v1104 = vsel %vm249, %v1016, 0
    %1106 = vmatprep.subr.mxu0 0.0
    %1107 = vmatpush1.msra.mxu0 0.0
    %1108 = vmatprep.subr.mxu0 0.0
    %1109 = vmatpush1.msra.mxu0 0.0
    %1110 = vmatprep.subr.mxu0 0.0
    %1111 = vmatpush1.msra.mxu0 0.0
    %1112 = vmatprep.subr.mxu0 0.0
    %1113 = vmatpush1.msra.mxu0 0.0
    %1114 = vmatprep.subr.mxu0 0.0
    %1115 = vmatpush1.msra.mxu0 0.0
    %1116 = vmatprep.subr.mxu0 0.0
    %1117 = vmatpush1.msra.mxu0 0.0
    %1118 = vmatprep.subr.mxu0 0.0
    %1119 = vmatpush1.msra.mxu0 0.0
    %1120 = vmatprep.subr.mxu0 0.0
    %1121 = vmatpush1.msra.mxu0 0.0
    %1122 = vmatprep.subr.mxu0 0.0
    %1123 = vmatpush1.msra.mxu0 0.0
    %1124 = vmatprep.subr.mxu0 0.0
    %1125 = vmatpush1.msra.mxu0 0.0
    %1126 = vmatprep.subr.mxu0 0.0
    %1127 = vmatpush1.msra.mxu0 0.0
    %1128 = vmatprep.subr.mxu0 0.0
    %1129 = vmatpush1.msra.mxu0 0.0
    %1130 = vmatprep.subr.mxu0 0.0
    %1131 = vmatpush1.msra.mxu0 0.0
    %1132 = vmatprep.subr.mxu0 0.0
    %1133 = vmatpush1.msra.mxu0 0.0
    %1134 = vmatprep.subr.mxu0 0.0
    %1135 = vmatpush1.msra.mxu0 %v1007
    %1136 = vmatprep.subr.mxu0 0.0
    %1137 = vmatpush1.msra.mxu0 %v1006
    %1138 = vmatprep.subr.mxu0 0.0
    %1139 = vmatpush2.msra.mxu0 0.0
    %1140 = vmatprep.subr.mxu0 0.0
    %1141 = vmatpush2.msra.mxu0 0.0
    %1142 = vmatprep.subr.mxu0 0.0
    %1143 = vmatpush2.msra.mxu0 0.0
    %1144 = vmatprep.subr.mxu0 0.0
    %1145 = vmatpush2.msra.mxu0 0.0
    %1146 = vmatprep.subr.mxu0 0.0
    %1147 = vmatpush2.msra.mxu0 0.0
    %1148 = vmatprep.subr.mxu0 0.0
    %1149 = vmatpush2.msra.mxu0 0.0
    %1150 = vmatprep.subr.mxu0 0.0
    %1151 = vmatpush2.msra.mxu0 0.0
    %1152 = vmatprep.subr.mxu0 0.0
    %1153 = vmatpush2.msra.mxu0 0.0
    %1154 = vmatprep.subr.mxu0 0.0
    %1155 = vmatpush2.msra.mxu0 0.0
    %1156 = vmatprep.subr.mxu0 0.0
    %1157 = vmatpush2.msra.mxu0 0.0
    %1158 = vmatprep.subr.mxu0 0.0
    %1159 = vmatpush2.msra.mxu0 0.0
    %1160 = vmatprep.subr.mxu0 0.0
    %1161 = vmatpush2.msra.mxu0 0.0
    %1162 = vmatprep.subr.mxu0 0.0
    %1163 = vmatpush2.msra.mxu0 0.0
    %1164 = vmatprep.subr.mxu0 0.0
    %1165 = vmatpush2.msra.mxu0 0.0
    %1166 = vmatprep.subr.mxu0 0.0
    %1167 = vmatpush2.msra.mxu0 0.0
    %1168 = vmatprep.subr.mxu0 0.0
    %1169 = vmatpush2.msra.mxu0 0.0
    %1170 = vmatprep.mubr.f32.mxu0 0.0
    %1171 = vmatmul.mubr.f32.gmra.mxu0 %v1101
    %v1172 = vpop.f32.mrf.mxu0
    %v1173 = vadd.f32 %v1093, %v1172
    %v1174 = vpop.f32.mrf.mxu0
    %1175 = vmatprep.mubr.f32.mxu0 0.0
    %1176 = vmatmul.mubr.f32.gmra.mxu0 %v1104
    %v1177 = vpop.f32.mrf.mxu0
    %v1178 = vpop.f32.mrf.mxu0
    %1179 = vdwg.mxu0
    %s1180 = scalar_lea.vmem %s3, 80
    %v1181 = vld [vmem:[%s1180] sm:$0xff]
    %1183 = vset.pattern.permute.xlu0 0
    %1184 = vperm.xlu0 %1183, %v1181
    %v1185 = vpop.permute.xlu0 %1184
    %v1187 = vadd.f32 %v1173, %v1185
    %1188 = vst [vmem:[#allocation5] sm:$0xf] %v1187
    // Predicated region
    $region26: #{tpu_custom_call.1} parent=1 // pred_check
      _
    $region27: #{tpu_custom_call.1} parent=1 // pred_check_branch
      %1190 = sbr.rel (0) target = $region29
    $region28: #{tpu_custom_call.1} parent=1 // pred_region
      %s1192 = ssub.s32 64, 64
      %1193 = vsyncadd [#allocation4], %s1192
      %s1195 = sshll.u32 [#allocation5], 4
      %s1196 = int_to_ptr.vmem [resolvable:$true] %s1195
      %1198 = dma.vmem_to_hbm [thread:$0]  %s1196, 64, %s5, [#allocation4]
    $region29: #{tpu_custom_call.1} parent=1 // pred_fallthru
      _
    // Predicated region
    $region30: #{tpu_custom_call.1} parent=1 // pred_check
      _
    $region31: #{tpu_custom_call.1} parent=1 // pred_check_branch
      %1200 = sbr.rel (0) target = $region33
    $region32: #{tpu_custom_call.1} parent=1 // pred_region
      %1201 = dma.done [#allocation4], 64
    $region33: #{tpu_custom_call.1} parent=1 // pred_fallthru
      _
    %1202 = vsyncpa [#allocation3], 1
    %1203 = vsyncpa [#allocation4], 1

</llo_original>
